<compile_context>
chip_gen: v7x
topology: tpu7x:2x2x1
jax: 0.10.0
libtpu: 0.0.40
codegen_flags: <defaults>
</compile_context>

<pallas_src>
import jax
import jax.numpy as jnp
from jax import lax
from jax.experimental import pallas as pl
from jax.experimental.pallas import tpu as pltpu


def _decompress_kernel(q_ref, p_ref, o_ref):
    # q_ref: (1, r, C), p_ref: (1, r, tHW), o_ref: (1, C, tHW)
    q = q_ref[0]                                           # (r, C)
    p = p_ref[0]                                           # (r, tHW)
    out = lax.dot_general(
        q, p,
        dimension_numbers=(((0,), (0,)), ((), ())),        # contract over r (MXU)
        preferred_element_type=jnp.float32,
    )                                                      # (C, tHW)
    o_ref[0] = out.astype(o_ref.dtype)


def _pick_hw_tile(HW, C, r, out_itemsize, budget_bytes=8 * 1024 * 1024):
    """Largest multiple-of-128 divisor of HW (capped at 2048 for pipeline
    depth) whose double-buffered per-step working set stays under
    `budget_bytes`, so the kernel fits the default scoped-VMEM limit on every
    generation (v5e 16 MiB, v6e/v7x 32 MiB) without flags.  Falls back to the
    full extent when HW is not a multiple of 128 (legal: a block dim equal to
    the full array dim bypasses the (8,128) rule)."""
    if HW % 128 != 0:
        return HW
    r_pad = max(8, r)            # sublane padding of the K-major factor tiles
    c_pad = max(128, C)          # lane padding of the resident q^T tile
    best = 128
    for t in range(128, min(HW, 2048) + 1, 128):
        if HW % t:
            continue
        per_step = 2 * (C * t * out_itemsize + r_pad * t * 4 + r_pad * c_pad * 4)
        if per_step <= budget_bytes:
            best = t
    return best


def powersvd_decompress(q, p, out_shape, *, out_dtype=None, force_pallas=False):
    """Batched rank-r decompression: out[b] = q[b] @ p[b]^T, reshaped to out_shape.

    q: (B, C, r), p: (B, HW, r)  (the layouts dist.recv fills in PyTorch)
    out_shape: (B, C, H, W) with H * W == HW
    """
    B, C, r = q.shape
    Bp, HW, rp = p.shape
    assert (B, r) == (Bp, rp)
    assert out_shape[0] == B and out_shape[1] == C
    assert out_shape[2] * out_shape[3] == HW

    out_dtype = q.dtype if out_dtype is None else out_dtype
    out_itemsize = jnp.dtype(out_dtype).itemsize

    # Tiny reconstructions: launch/grid overhead dominates -> let XLA fuse it.
    if not force_pallas and (HW < 128 or B * C * HW * out_itemsize < (1 << 20)):
        flat = jnp.einsum("bcr,bhr->bch", q, p).astype(out_dtype)
        return flat.reshape(out_shape)

    # One-off relayout: put rank on the sublane axis (pad 4->8, not 4->128).
    q_t = jnp.swapaxes(q, 1, 2)            # (B, r, C)
    p_t = jnp.swapaxes(p, 1, 2)            # (B, r, HW)

    t_hw = _pick_hw_tile(HW, C, r, out_itemsize)
    grid = (B, HW // t_hw)

    cost = pl.CostEstimate(
        flops=2 * B * C * HW * r,
        transcendentals=0,
        bytes_accessed=4 * (B * C * r + B * HW * r) + out_itemsize * B * C * HW,
    )

    flat = pl.pallas_call(
        _decompress_kernel,
        out_shape=jax.ShapeDtypeStruct((B, C, HW), out_dtype),
        grid_spec=pltpu.PrefetchScalarGridSpec(
            num_scalar_prefetch=0,
            grid=grid,
            in_specs=[
                # q^T: resident per batch (block index constant along h)
                pl.BlockSpec((1, r, C), lambda b, h: (b, 0, 0)),
                # p^T: lane-dense HW tile
                pl.BlockSpec((1, r, t_hw), lambda b, h: (b, 0, h)),
            ],
            out_specs=pl.BlockSpec((1, C, t_hw), lambda b, h: (b, 0, h)),
        ),
        compiler_params=pltpu.CompilerParams(
            dimension_semantics=("parallel", "parallel"),
        ),
        cost_estimate=cost,
    )(q_t, p_t)
    return flat.reshape(out_shape)


class PowerSVDClientRecvLayerJAX:
    """JAX/Pallas equivalent of PowerSVDClientRecvLayer (forward only).

    Buffers that PyTorch fills with torch.rand(...) / dist.recv are initialized
    deterministically from a PRNG key here, in the same (B, HW, r)/(B, C, r)
    layouts the wire protocol uses.
    """

    def __init__(self, rank, shape, n_iter, key, *, out_dtype=None, force_pallas=False):
        B, C, H, W = (int(shape[0]), int(shape[1]), int(shape[2]), int(shape[3]))
        kp, kq, kgp, kgq = jax.random.split(key, 4)
        self.p_buffer = [jax.random.uniform(kp, (B, H * W, rank), dtype=jnp.float32)]
        self.q_buffer = [jax.random.uniform(kq, (B, C, rank), dtype=jnp.float32)]
        self.grad_p_buffer = [jax.random.uniform(kgp, (B, H * W, rank), dtype=jnp.float32)]
        self.grad_q_buffer = [jax.random.uniform(kgq, (B, C, rank), dtype=jnp.float32)]
        self.iter = n_iter
        self.out_dtype = out_dtype
        self.force_pallas = force_pallas
        # TODO(synk): dist.recv of p/q from recv_rank (forward) and the
        # backward-side PowerSVD + dist.isend are distributed plumbing with no
        # single-device Pallas equivalent; the buffers above stand in for them.

    def forward(self, x):
        # Forward discards the values of `x`; only x.shape is used.
        return powersvd_decompress(
            self.q_buffer[0], self.p_buffer[0], x.shape,
            out_dtype=self.out_dtype, force_pallas=self.force_pallas)

    __call__ = forward


if __name__ == "__main__":
    key = jax.random.PRNGKey(0)
    k_in, k_layer = jax.random.split(key)

    B, C, H, W = 2, 4, 16, 16
    rank = 4
    x = jax.random.normal(k_in, (B, C, H, W), dtype=jnp.float32)

    # force_pallas=True so the tiny test shapes still exercise the kernel path
    # (production shapes dispatch to Pallas automatically).
    layer = PowerSVDClientRecvLayerJAX(
        rank, (B, C, H, W), n_iter=2, key=k_layer, force_pallas=True)
    out = jax.block_until_ready(layer(x))

    # Reference check in plain JAX (same math as PowerSVDDecompress).
    ref = jnp.matmul(
        layer.q_buffer[0], jnp.swapaxes(layer.p_buffer[0], 1, 2)
    ).reshape(B, C, H, W)
    assert out.shape == (B, C, H, W)
    assert out.dtype == jnp.float32
    assert jnp.allclose(out, ref, atol=1e-5, rtol=1e-5)

    print("KERNEL_OK")
</pallas_src>

<mosaic_0001>
module attributes {stable_mosaic.version = 11 : i64} {
  func.func @_decompress_kernel(%arg0: i32, %arg1: i32, %arg2: memref<1x4x4xf32, #tpu.memory_space<vmem>>, %arg3: memref<1x4x256xf32, #tpu.memory_space<vmem>>, %arg4: memref<1x4x256xf32, #tpu.memory_space<vmem>>) attributes {dimension_semantics = [#tpu.dimension_semantics<parallel>, #tpu.dimension_semantics<parallel>], iteration_bounds = array<i64: 2, 1>, scalar_prefetch = 0 : i64, scratch_operands = 0 : i64, tpu.core_type = #tpu.core_type<tc>, window_params = [{transform_indices = @transform_0, window_bounds = array<i64: 1, 4, 4>}, {transform_indices = @transform_1, window_bounds = array<i64: 1, 4, 256>}, {transform_indices = @transform_2, window_bounds = array<i64: 1, 4, 256>}]} {
    %c0 = arith.constant 0 : index
    %c0_0 = arith.constant 0 : index
    %c0_1 = arith.constant 0 : index
    %0 = vector.load %arg2[%c0, %c0_0, %c0_1] : memref<1x4x4xf32, #tpu.memory_space<vmem>>, vector<1x4x4xf32>
    %1 = vector.shape_cast %0 : vector<1x4x4xf32> to vector<4x4xf32>
    %c0_2 = arith.constant 0 : index
    %c0_3 = arith.constant 0 : index
    %c0_4 = arith.constant 0 : index
    %2 = vector.load %arg3[%c0_2, %c0_3, %c0_4] : memref<1x4x256xf32, #tpu.memory_space<vmem>>, vector<1x4x256xf32>
    %3 = vector.shape_cast %2 : vector<1x4x256xf32> to vector<4x256xf32>
    %cst = arith.constant dense<0.000000e+00> : vector<4x256xf32>
    %4 = tpu.matmul %1, %3, %cst {dimension_numbers = #tpu.dot_dimension_numbers<[0], [0], [1], [1], [0, 1, 1, 1], [], []>} : vector<4x4xf32>, vector<4x256xf32>, vector<4x256xf32> -> vector<4x256xf32>
    %c0_5 = arith.constant 0 : index
    %c0_6 = arith.constant 0 : index
    %c0_7 = arith.constant 0 : index
    %5 = vector.load %arg4[%c0_5, %c0_6, %c0_7] : memref<1x4x256xf32, #tpu.memory_space<vmem>>, vector<1x4x256xf32>
    %6 = vector.shape_cast %5 : vector<1x4x256xf32> to vector<4x256xf32>
    %7 = vector.shape_cast %4 : vector<4x256xf32> to vector<1x4x256xf32>
    tpu.vector_store %arg4[%c0_5, %c0_6, %c0_7], %7 {strides = array<i32>} : memref<1x4x256xf32, #tpu.memory_space<vmem>>, vector<1x4x256xf32>,
    return
  }
  func.func @transform_0(%arg0: i32, %arg1: i32) -> (i32, i32, i32) {
    %c0_i32 = arith.constant 0 : i32
    %c0_i32_0 = arith.constant 0 : i32
    %c0_i32_1 = arith.constant 0 : i32
    return %arg0, %c0_i32, %c0_i32_0 : i32, i32, i32
  }
  func.func @transform_1(%arg0: i32, %arg1: i32) -> (i32, i32, i32) {
    %c0_i32 = arith.constant 0 : i32
    %c0_i32_0 = arith.constant 0 : i32
    return %arg0, %c0_i32, %arg1 : i32, i32, i32
  }
  func.func @transform_2(%arg0: i32, %arg1: i32) -> (i32, i32, i32) {
    %c0_i32 = arith.constant 0 : i32
    %c0_i32_0 = arith.constant 0 : i32
    return %arg0, %c0_i32, %arg1 : i32, i32, i32
  }
}

</mosaic_0001>

<llo_original>
// kernel: tpu_custom_call.1
$region0: #{tpu_custom_call.1}
  #allocation0 [shape = 'u32[]', space=smem, size = 0x4, offset = 0x4, fixed_abs, tag = 'smem constant byte address 0x4 - core index']
  #allocation1 [shape = 'u32[144,128]{1,0:T(1,128)}', space=vmem, size = 0x12000, scoped, tag = 'internal scratch']
  %s0 = inlined_call_operand.hbm [shape: f32[2,4,4], index: 0, kind: input, shape index: {}]
  %s1 = inlined_call_operand.hbm [shape: f32[2,4,256], index: 1, kind: input, shape index: {}]
  %s2 = inlined_call_operand.hbm [shape: f32[2,4,256], index: 2, kind: output, shape index: {}]
  %s3 = sld [smem:[#allocation0]]
  $region49: #{tpu_custom_call.1} parent=0
    _
  %s5 = ssub.s32 1, %s3
  %s6 = scalar_select 0, %s5, %s3
  $region1: #{tpu_custom_call.1} parent=0
    #allocation2 [shape = 'u8[4096]{0}', space=vmem, size = 0x1000, scoped, tag = 'input window, operand 0']
    #allocation3 [shape = 's32[2]{0}', space=sflag, size = 0x8, scoped, tag = 'scoped memory for tpu_custom_call.1']
    #allocation4 [shape = 's32[2]{0}', space=sflag, size = 0x8, scoped, tag = 'scoped memory for tpu_custom_call.1']
    #allocation5 [shape = 'u8[8192]{0}', space=vmem, size = 0x2000, scoped, tag = 'input window, operand 1']
    #allocation6 [shape = 's32[2]{0}', space=sflag, size = 0x8, scoped, tag = 'scoped memory for tpu_custom_call.1']
    #allocation7 [shape = 'u8[8192]{0}', space=vmem, size = 0x2000, scoped, tag = 'output window, operand 0']
    %7 = vsyncpa [#allocation3], 0
    %s8 = scalar_lea.sflag [#allocation3], 1
    %9 = vsyncpa %s8, 0
    %10 = vsyncpa [#allocation6], 0
    %s11 = scalar_lea.sflag [#allocation6], 1
    %12 = vsyncpa %s11, 0
    %13 = vsyncpa [#allocation4], 0
    %s14 = scalar_lea.sflag [#allocation4], 1
    %15 = vsyncpa %s14, 0
    loop: start=0, step=1, limit=4
    $region2: #{tpu_custom_call.1} parent=1 // loop_pre_header
      _
    $region3: #{tpu_custom_call.1} parent=1 // loop_header
      %s17 = sphi 0, %s21
      %p18 = scmp.ge.s32.totalorder %s17, 4
      %s24 = sphi 0, %s36
      %s25 = sphi 0, %s32
      %s26 = sphi 0, %s24
      %s27 = sphi 0, %s25
      %s28 = sphi 0, %s26
      %s29 = sphi 0, %s27
      %s39 = sphi 0, %s41
      %s42 = sphi 0, %s39
      %s43 = sphi 0, %s42
      %s59 = sphi 0, %s43
      %s67 = sphi 0, %s69
      %s70 = sphi 0, %s67
      %s71 = sphi 0, %s70
      %s87 = sphi 0, %s71
      %s95 = sphi 0, %s97
      %s98 = sphi 0, %s95
      %s99 = sphi 0, %s98
      %s115 = sphi 0, %s99
    $region4: #{tpu_custom_call.1} parent=1 // loop_header_branch
      %20 = sbr.rel (%p18) target = $region8
    $region5: #{tpu_custom_call.1} parent=1 // loop_body
      %s22 = ssub.s32 %s17, 1
      %s23 = ssub.s32 %s17, 2
      %s30 = sadd.s32 1, %s25
      %p31 = scmp.ge.s32.totalorder %s30, 1
      %s32 = scalar_select %p31, 0, %s30
      %s33 = sadd.s32 1, %s24
      %s34 = scalar_select %p31, %s33, %s24
      %p35 = scmp.ge.s32.totalorder %s34, 2
      %s36 = scalar_select %p35, 0, %s34
      %s37 = ssub.s32 %s24, %s36
      %p38 = scmp.eq.s32.totalorder %s37, 0
      %s40 = sadd.s32 %s39, 1
      %s41 = scalar_select %p38, %s39, %s40
      %p44 = pneg %p38
      %p45 = scmp.eq.s32.totalorder %s17, 1
      %p46 = por %p44, %p45
      %p47 = scmp.ne.s32.totalorder %s39, %s42
      %p48 = scmp.eq.s32.totalorder %s17, 0
      %p49 = por %p47, %p48
      %p50 = scmp.ne.s32.totalorder %s39, %s42
      %p51 = scmp.eq.s32.totalorder %s22, 1
      %p52 = por %p50, %p51
      %p53 = scmp.ne.s32.totalorder %s42, %s43
      %p54 = scmp.eq.s32.totalorder %s22, 0
      %p55 = por %p53, %p54
      %p56 = scmp.ne.s32.totalorder %s42, %s43
      %p57 = scmp.eq.s32.totalorder %s23, 1
      %p58 = por %p56, %p57
      %p60 = scmp.ne.s32.totalorder %s43, %s59
      %p61 = scmp.eq.s32.totalorder %s23, 0
      %p62 = por %p60, %p61
      %s63 = ssub.s32 %s24, %s36
      %s64 = ssub.s32 %s25, %s32
      %s65 = sor.u32 %s63, %s64
      %p66 = scmp.eq.s32.totalorder %s65, 0
      %s68 = sadd.s32 %s67, 1
      %s69 = scalar_select %p66, %s67, %s68
      %p72 = pneg %p66
      %p73 = scmp.eq.s32.totalorder %s17, 1
      %p74 = por %p72, %p73
      %p75 = scmp.ne.s32.totalorder %s67, %s70
      %p76 = scmp.eq.s32.totalorder %s17, 0
      %p77 = por %p75, %p76
      %p78 = scmp.ne.s32.totalorder %s67, %s70
      %p79 = scmp.eq.s32.totalorder %s22, 1
      %p80 = por %p78, %p79
      %p81 = scmp.ne.s32.totalorder %s70, %s71
      %p82 = scmp.eq.s32.totalorder %s22, 0
      %p83 = por %p81, %p82
      %p84 = scmp.ne.s32.totalorder %s70, %s71
      %p85 = scmp.eq.s32.totalorder %s23, 1
      %p86 = por %p84, %p85
      %p88 = scmp.ne.s32.totalorder %s71, %s87
      %p89 = scmp.eq.s32.totalorder %s23, 0
      %p90 = por %p88, %p89
      %s91 = ssub.s32 %s24, %s36
      %s92 = ssub.s32 %s25, %s32
      %s93 = sor.u32 %s91, %s92
      %p94 = scmp.eq.s32.totalorder %s93, 0
      %s96 = sadd.s32 %s95, 1
      %s97 = scalar_select %p94, %s95, %s96
      %p100 = pneg %p94
      %p101 = scmp.eq.s32.totalorder %s17, 1
      %p102 = por %p100, %p101
      %p103 = scmp.ne.s32.totalorder %s95, %s98
      %p104 = scmp.eq.s32.totalorder %s17, 0
      %p105 = por %p103, %p104
      %p106 = scmp.ne.s32.totalorder %s95, %s98
      %p107 = scmp.eq.s32.totalorder %s22, 1
      %p108 = por %p106, %p107
      %p109 = scmp.ne.s32.totalorder %s98, %s99
      %p110 = scmp.eq.s32.totalorder %s22, 0
      %p111 = por %p109, %p110
      %p112 = scmp.ne.s32.totalorder %s98, %s99
      %p113 = scmp.eq.s32.totalorder %s23, 1
      %p114 = por %p112, %p113
      %p116 = scmp.ne.s32.totalorder %s99, %s115
      %p117 = scmp.eq.s32.totalorder %s23, 0
      %p118 = por %p116, %p117
      %p119 = scmp.le.s32.totalorder 1, %s17
      %p120 = scmp.lt.s32.totalorder %s17, 3
      %p121 = pnand %p119, %p120
      %p122 = pneg %p121
      // Predicated region
      $region9: #{tpu_custom_call.1} parent=5 // pred_check
        _
      $region10: #{tpu_custom_call.1} parent=5 // pred_check_branch
        %124 = sbr.rel (%p121) target = $region12
      $region11: #{tpu_custom_call.1} parent=5 // pred_region
        %s125 = ssub.s32 %s17, 1
      $region12: #{tpu_custom_call.1} parent=5 // pred_fallthru
        _
      %p126 = scmp.lt.s32.totalorder %s17, 2
      // Predicated region
      $region13: #{tpu_custom_call.1} parent=5 // pred_check
        %p127 = pneg %p126
      $region14: #{tpu_custom_call.1} parent=5 // pred_check_branch
        %129 = sbr.rel (%p127) target = $region16
      $region15: #{tpu_custom_call.1} parent=5 // pred_region
        // Predicated region
        $region17: #{tpu_custom_call.1} parent=15 // pred_check
          %p130 = pneg %p49
        $region18: #{tpu_custom_call.1} parent=15 // pred_check_branch
          %132 = sbr.rel (%p130) target = $region20
        $region19: #{tpu_custom_call.1} parent=15 // pred_region
          %s133 = sand.u32 %s39, 1
          %s134 = scalar_lea.sflag [#allocation3], %s133
          %s135 = sand.u32 %s39, 1
          %s136 = smul.addr %s135, 4
          %s137 = scalar_lea.vmem [#allocation2], %s136
          %s139 = ssub.s32 64, 64
          %140 = vsyncadd %s134, %s139
          %s141 = smul.addr %s24, 64
          %s142 = scalar_lea.hbm %s0, %s141
          %s144 = sshll.u32 %s137, 4
          %s145 = int_to_ptr.vmem [resolvable:$true] %s144
          %147 = dma.hbm_to_vmem [thread:$0]  %s142, 64, %s145, %s134
        $region20: #{tpu_custom_call.1} parent=15 // pred_fallthru
          _
        // Predicated region
        $region21: #{tpu_custom_call.1} parent=15 // pred_check
          %p148 = pneg %p77
        $region22: #{tpu_custom_call.1} parent=15 // pred_check_branch
          %150 = sbr.rel (%p148) target = $region24
        $region23: #{tpu_custom_call.1} parent=15 // pred_region
          %s151 = sand.u32 %s67, 1
          %s152 = scalar_lea.sflag [#allocation6], %s151
          %s153 = sand.u32 %s67, 1
          %s154 = smul.addr %s153, 8
          %s155 = scalar_lea.vmem [#allocation5], %s154
          %s156 = smul.u32 2, %s25
          %s158 = ssub.s32 128, 128
          %159 = vsyncadd %s152, %s158
          %s160 = smul.addr %s24, 2
          %s161 = sadd.s32 %s156, %s160
          %s162 = smul.addr %s161, 64
          %s163 = scalar_lea.hbm %s1, %s162
          %s165 = sshll.u32 %s155, 4
          %s166 = int_to_ptr.vmem [resolvable:$true] %s165
          %168 = dma.hbm_to_vmem [thread:$0]  %s163, 128, %s166, %s152
        $region24: #{tpu_custom_call.1} parent=15 // pred_fallthru
          _
      $region16: #{tpu_custom_call.1} parent=5 // pred_fallthru
        _
      %p169 = scmp.le.s32.totalorder 1, %s17
      %p170 = scmp.lt.s32.totalorder %s17, 3
      %p171 = pnand %p169, %p170
      %p172 = pneg %p171
      // Predicated region
      $region25: #{tpu_custom_call.1} parent=5 // pred_check
        _
      $region26: #{tpu_custom_call.1} parent=5 // pred_check_branch
        %174 = sbr.rel (%p171) target = $region28
      $region27: #{tpu_custom_call.1} parent=5 // pred_region
        %s175 = ssub.s32 %s17, 1
        %s176 = sand.u32 %s42, 1
        %s177 = scalar_lea.sflag [#allocation3], %s176
        %s178 = sand.u32 %s42, 1
        %s179 = smul.addr %s178, 4
        %s180 = scalar_lea.vmem [#allocation2], %s179
        // Predicated region
        $region29: #{tpu_custom_call.1} parent=27 // pred_check
          %p181 = pneg %p55
        $region30: #{tpu_custom_call.1} parent=27 // pred_check_branch
          %183 = sbr.rel (%p181) target = $region32
        $region31: #{tpu_custom_call.1} parent=27 // pred_region
          %184 = dma.done %s177, 64
        $region32: #{tpu_custom_call.1} parent=27 // pred_fallthru
          _
        %s185 = sand.u32 %s70, 1
        %s186 = scalar_lea.sflag [#allocation6], %s185
        %s187 = sand.u32 %s70, 1
        %s188 = smul.addr %s187, 8
        %s189 = scalar_lea.vmem [#allocation5], %s188
        // Predicated region
        $region33: #{tpu_custom_call.1} parent=27 // pred_check
          %p190 = pneg %p83
        $region34: #{tpu_custom_call.1} parent=27 // pred_check_branch
          %192 = sbr.rel (%p190) target = $region36
        $region35: #{tpu_custom_call.1} parent=27 // pred_region
          %193 = dma.done %s186, 128
        $region36: #{tpu_custom_call.1} parent=27 // pred_fallthru
          _
        %s194 = sand.u32 %s42, 1
        %s195 = scalar_lea.sflag [#allocation3], %s194
        %s196 = sand.u32 %s42, 1
        %s197 = smul.addr %s196, 4
        %s198 = scalar_lea.vmem [#allocation2], %s197
        %p199 = pneg %p55
        %p200 = pneg %p52
        %s201 = sand.u32 %s70, 1
        %s202 = scalar_lea.sflag [#allocation6], %s201
        %s203 = sand.u32 %s70, 1
        %s204 = smul.addr %s203, 8
        %s205 = scalar_lea.vmem [#allocation5], %s204
        %p206 = pneg %p83
        %p207 = pneg %p80
        %p208 = pneg %p111
        %p209 = pneg %p108
        %s210 = sand.u32 %s98, 1
        %s211 = scalar_lea.sflag [#allocation4], %s210
        %s212 = sand.u32 %s98, 1
        %s213 = smul.addr %s212, 8
        %s214 = scalar_lea.vmem [#allocation7], %s213
        %s215 = smul.u32 2, %s27
        %s216 = smul.u32 2, %s27
        %v217 = vld [vmem:[%s180] sm:$0xf]
        %v218 = vld [vmem:[%s189] sm:$0xff]
        %219 = vxpose.xlu0.b32.start [1/16] %v217, 128
        %220 = vxpose.xlu0.b32.cont [2/16] 0.0, 128
        %221 = vxpose.xlu0.b32.cont [3/16] 0.0, 128
        %222 = vxpose.xlu0.b32.cont [4/16] 0.0, 128
        %223 = vxpose.xlu0.b32.cont [5/16] 0.0, 128
        %224 = vxpose.xlu0.b32.cont [6/16] 0.0, 128
        %225 = vxpose.xlu0.b32.cont [7/16] 0.0, 128
        %226 = vxpose.xlu0.b32.cont [8/16] 0.0, 128
        %227 = vxpose.xlu0.b32.cont [9/16] 0.0, 128
        %228 = vxpose.xlu0.b32.cont [10/16] 0.0, 128
        %229 = vxpose.xlu0.b32.cont [11/16] 0.0, 128
        %230 = vxpose.xlu0.b32.cont [12/16] 0.0, 128
        %231 = vxpose.xlu0.b32.cont [13/16] 0.0, 128
        %232 = vxpose.xlu0.b32.cont [14/16] 0.0, 128
        %233 = vxpose.xlu0.b32.cont [15/16] 0.0, 128
        %234 = vxpose.xlu0.b32.end [16/16] 0.0, 128
        %v235 = vpop.trf.xlu0
        %v236 = vpop.trf.xlu0
        %v237 = vpop.trf.xlu0
        %v238 = vpop.trf.xlu0
        %v239 = vpop.trf.xlu0
        %v240 = vpop.trf.xlu0
        %v241 = vpop.trf.xlu0
        %v242 = vpop.trf.xlu0
        %v243 = vpop.trf.xlu0
        %v244 = vpop.trf.xlu0
        %v245 = vpop.trf.xlu0
        %v246 = vpop.trf.xlu0
        %v247 = vpop.trf.xlu0
        %v248 = vpop.trf.xlu0
        %v249 = vpop.trf.xlu0
        %v250 = vpop.trf.xlu0
        %v252 = vcombine.high %v218, %v218
        %vm253 = vcmask 31744
        %v255 = vsel %vm253, %v235, 0
        %vm257 = vcmask 1043456
        %v258 = vsel %vm257, %v218, 0
        %v260 = vsel %vm257, %v252, 0
        %262 = vmatprep.subr.mxu0 %v260
        %263 = vmatpush1.msra.mxu0 %v258
        %264 = vmatprep.subr.mxu0 0.0
        %265 = vmatpush1.msra.mxu0 0.0
        %266 = vmatprep.subr.mxu0 0.0
        %267 = vmatpush1.msra.mxu0 0.0
        %268 = vmatprep.subr.mxu0 0.0
        %269 = vmatpush1.msra.mxu0 0.0
        %270 = vmatprep.subr.mxu0 0.0
        %271 = vmatpush1.msra.mxu0 0.0
        %272 = vmatprep.subr.mxu0 0.0
        %273 = vmatpush1.msra.mxu0 0.0
        %274 = vmatprep.subr.mxu0 0.0
        %275 = vmatpush1.msra.mxu0 0.0
        %276 = vmatprep.subr.mxu0 0.0
        %277 = vmatpush1.msra.mxu0 0.0
        %278 = vmatprep.subr.mxu0 0.0
        %279 = vmatpush1.msra.mxu0 0.0
        %280 = vmatprep.subr.mxu0 0.0
        %281 = vmatpush1.msra.mxu0 0.0
        %282 = vmatprep.subr.mxu0 0.0
        %283 = vmatpush1.msra.mxu0 0.0
        %284 = vmatprep.subr.mxu0 0.0
        %285 = vmatpush1.msra.mxu0 0.0
        %286 = vmatprep.subr.mxu0 0.0
        %287 = vmatpush1.msra.mxu0 0.0
        %288 = vmatprep.subr.mxu0 0.0
        %289 = vmatpush1.msra.mxu0 0.0
        %290 = vmatprep.subr.mxu0 0.0
        %291 = vmatpush1.msra.mxu0 0.0
        %292 = vmatprep.subr.mxu0 0.0
        %293 = vmatpush1.msra.mxu0 0.0
        %294 = vmatprep.subr.mxu0 0.0
        %295 = vmatpush1.msra.mxu0 0.0
        %296 = vmatprep.subr.mxu0 0.0
        %297 = vmatpush1.msra.mxu0 0.0
        %298 = vmatprep.subr.mxu0 0.0
        %299 = vmatpush1.msra.mxu0 0.0
        %300 = vmatprep.subr.mxu0 0.0
        %301 = vmatpush1.msra.mxu0 0.0
        %302 = vmatprep.subr.mxu0 0.0
        %303 = vmatpush1.msra.mxu0 0.0
        %304 = vmatprep.subr.mxu0 0.0
        %305 = vmatpush1.msra.mxu0 0.0
        %306 = vmatprep.subr.mxu0 0.0
        %307 = vmatpush1.msra.mxu0 0.0
        %308 = vmatprep.subr.mxu0 0.0
        %309 = vmatpush1.msra.mxu0 0.0
        %310 = vmatprep.subr.mxu0 0.0
        %311 = vmatpush1.msra.mxu0 0.0
        %312 = vmatprep.subr.mxu0 0.0
        %313 = vmatpush1.msra.mxu0 0.0
        %314 = vmatprep.subr.mxu0 0.0
        %315 = vmatpush1.msra.mxu0 0.0
        %316 = vmatprep.subr.mxu0 0.0
        %317 = vmatpush1.msra.mxu0 0.0
        %318 = vmatprep.subr.mxu0 0.0
        %319 = vmatpush1.msra.mxu0 0.0
        %320 = vmatprep.subr.mxu0 0.0
        %321 = vmatpush1.msra.mxu0 0.0
        %322 = vmatprep.subr.mxu0 0.0
        %323 = vmatpush1.msra.mxu0 0.0
        %324 = vmatprep.subr.mxu0 0.0
        %325 = vmatpush1.msra.mxu0 0.0
        %326 = vmatprep.mubr.f32.mxu0 0.0
        %327 = vmatmul.mubr.f32.gmra.mrb[0].mxu0 %v255
        %v328 = vpop.f32.mrb[0].mxu0
        %v329 = vadd.f32 0.0, %v328
        %v330 = vpop.f32.mrb[0].mxu0
        %v331 = vadd.f32 0.0, %v330
        %332 = vdwg.mxu0
        %v335 = vcombine.low %v329, %v331
        %337 = vst [vmem:[%s214] sm:$0xff] %v335
        %s338 = sand.u32 %s98, 1
        %s339 = scalar_lea.sflag [#allocation4], %s338
        %s340 = sand.u32 %s98, 1
        %s341 = smul.addr %s340, 8
        %s342 = scalar_lea.vmem [#allocation7], %s341
        // Predicated region
        $region37: #{tpu_custom_call.1} parent=27 // pred_check
          %p343 = pneg %p108
        $region38: #{tpu_custom_call.1} parent=27 // pred_check_branch
          %345 = sbr.rel (%p343) target = $region40
        $region39: #{tpu_custom_call.1} parent=27 // pred_region
          %s346 = smul.u32 2, %s27
          %s348 = ssub.s32 128, 128
          %349 = vsyncadd %s339, %s348
          %s350 = smul.addr %s26, 2
          %s351 = sadd.s32 %s346, %s350
          %s352 = smul.addr %s351, 64
          %s353 = scalar_lea.hbm %s2, %s352
          %s355 = sshll.u32 %s342, 4
          %s356 = int_to_ptr.vmem [resolvable:$true] %s355
          %358 = dma.vmem_to_hbm [thread:$0]  %s356, 128, %s353, %s339
        $region40: #{tpu_custom_call.1} parent=27 // pred_fallthru
          _
      $region28: #{tpu_custom_call.1} parent=5 // pred_fallthru
        _
      %p359 = scmp.le.s32.totalorder 2, %s17
      // Predicated region
      $region41: #{tpu_custom_call.1} parent=5 // pred_check
        %p360 = pneg %p359
      $region42: #{tpu_custom_call.1} parent=5 // pred_check_branch
        %362 = sbr.rel (%p360) target = $region44
      $region43: #{tpu_custom_call.1} parent=5 // pred_region
        %s363 = ssub.s32 %s17, 2
        // Predicated region
        $region45: #{tpu_custom_call.1} parent=43 // pred_check
          %p364 = pneg %p114
        $region46: #{tpu_custom_call.1} parent=43 // pred_check_branch
          %366 = sbr.rel (%p364) target = $region48
        $region47: #{tpu_custom_call.1} parent=43 // pred_region
          %s367 = sand.u32 %s99, 1
          %s368 = scalar_lea.sflag [#allocation4], %s367
          %s369 = sand.u32 %s99, 1
          %s370 = smul.addr %s369, 8
          %s371 = scalar_lea.vmem [#allocation7], %s370
          %372 = dma.done %s368, 128
        $region48: #{tpu_custom_call.1} parent=43 // pred_fallthru
          _
      $region44: #{tpu_custom_call.1} parent=5 // pred_fallthru
        _
    $region6: #{tpu_custom_call.1} parent=1 // loop_footer
      %s21 = sadd.s32 1, %s17
    $region7: #{tpu_custom_call.1} parent=1 // loop_footer_branch
      %16 = sbr.rel target = $region3
    $region8: #{tpu_custom_call.1} parent=1 // loop_exit
      _
    %373 = vsyncpa [#allocation3], 1
    %s374 = scalar_lea.sflag [#allocation3], 1
    %375 = vsyncpa %s374, 1
    %376 = vsyncpa [#allocation6], 1
    %s377 = scalar_lea.sflag [#allocation6], 1
    %378 = vsyncpa %s377, 1
    %379 = vsyncpa [#allocation4], 1
    %s380 = scalar_lea.sflag [#allocation4], 1
    %381 = vsyncpa %s380, 1

</llo_original>
